<compile_context>
chip_gen: v7x
topology: tpu7x:2x2x1
jax: 0.10.0
libtpu: 0.0.40
codegen_flags: <defaults>
</compile_context>

<pallas_src>
import functools

import jax
import jax.numpy as jnp
from jax.experimental import pallas as pl
from jax.experimental.pallas import tpu as pltpu


def _sage_kernel_agg_first(a_ref, xs_ref, xd_ref, ws_ref, wn_ref, b_ref,
                           o_ref, acc_ref, *, apply_relu):
    """Accumulate h_neigh = A @ X over k; apply both linears + bias at k==last.

    Used when F_in <= F_out (keeps the narrower dim on the lane axis of the
    N^2-scaling aggregation matmul)."""
    k = pl.program_id(1)

    @pl.when(k == 0)
    def _():
        acc_ref[...] = jnp.zeros_like(acc_ref)

    # Dominant N^2-scaling matmul: bf16 adjacency tile x bf16 src features,
    # f32 accumulation on the MXU.
    acc_ref[...] += jnp.dot(a_ref[...], xs_ref[...].astype(jnp.bfloat16),
                            preferred_element_type=jnp.float32)

    @pl.when(k == pl.num_programs(1) - 1)
    def _():
        # Epilogue runs once per row tile, off the A-matmul critical path.
        h = (jnp.dot(xd_ref[...], ws_ref[...], preferred_element_type=jnp.float32)
             + jnp.dot(acc_ref[...], wn_ref[...], preferred_element_type=jnp.float32)
             + b_ref[...])
        if apply_relu:
            h = jnp.maximum(h, 0.0)
        o_ref[...] = h.astype(o_ref.dtype)


def _sage_kernel_proj_first(a_ref, xs_ref, xd_ref, ws_ref, wn_ref, b_ref,
                            o_ref, acc_ref, *, apply_relu):
    """Re-associated variant: accumulate A @ (X @ W_neigh) over k.

    Used when F_out < F_in so the N^2-scaling matmul writes only F_out lanes."""
    k = pl.program_id(1)

    @pl.when(k == 0)
    def _():
        acc_ref[...] = jnp.zeros_like(acc_ref)

    # Small projection first (F_in -> F_out), then the big aggregation matmul.
    y = jnp.dot(xs_ref[...], wn_ref[...], preferred_element_type=jnp.float32)
    acc_ref[...] += jnp.dot(a_ref[...], y.astype(jnp.bfloat16),
                            preferred_element_type=jnp.float32)

    @pl.when(k == pl.num_programs(1) - 1)
    def _():
        h = (acc_ref[...]
             + jnp.dot(xd_ref[...], ws_ref[...], preferred_element_type=jnp.float32)
             + b_ref[...])
        if apply_relu:
            h = jnp.maximum(h, 0.0)
        o_ref[...] = h.astype(o_ref.dtype)


def _round_up(x, m):
    return (x + m - 1) // m * m


def _pick_tiles(n):
    """Device-aware (TM, TK, padded N, vmem_limit_bytes)."""
    # Conservative defaults sized for v7x (64 MiB physical VMEM per TensorCore).
    tm_max, tk_max, vmem_limit = 256, 1024, 48 * 1024 * 1024
    try:
        vmem = getattr(pltpu.get_tpu_info(), "vmem_capacity_bytes", None)
        if vmem is not None and vmem >= 128 * 1024 * 1024:
            # v5e / v6e: 128 MiB VMEM -> bigger tiles, fewer/larger DMAs.
            tm_max, tk_max, vmem_limit = 512, 2048, 96 * 1024 * 1024
    except Exception:
        pass
    if n <= tm_max:
        return n, n, n, vmem_limit                   # single block (full arrays)
    if n <= tk_max:
        n_pad = _round_up(n, tm_max)
        return tm_max, n_pad, n_pad, vmem_limit      # single reduction step
    n_pad = _round_up(n, tk_max)                     # tk_max is a multiple of tm_max
    return tm_max, tk_max, n_pad, vmem_limit


def sage_layer(a_bf16, x, w_self, w_neigh, bias, *, apply_relu):
    """One SAGEConv('mean') layer as a tiled, pipelined Pallas call."""
    n, f_in = x.shape
    f_out = w_self.shape[1]
    tm, tk, n_pad, vmem_limit = _pick_tiles(n)

    if n_pad != n:
        pad = n_pad - n
        # Zero columns/rows contribute nothing to the aggregation; padded dst
        # rows are sliced off below.
        a_bf16 = jnp.pad(a_bf16, ((0, pad), (0, pad)))
        x = jnp.pad(x, ((0, pad), (0, 0)))

    bias2d = bias.reshape(1, f_out).astype(jnp.float32)

    # Pick the association order that puts min(F_in, F_out) on the lane axis of
    # the N^2-scaling aggregation matmul.
    aggregate_first = f_in <= f_out
    kernel = functools.partial(
        _sage_kernel_agg_first if aggregate_first else _sage_kernel_proj_first,
        apply_relu=apply_relu)
    acc_width = f_in if aggregate_first else f_out

    grid = (n_pad // tm, n_pad // tk)
    out = pl.pallas_call(
        kernel,
        out_shape=jax.ShapeDtypeStruct((n_pad, f_out), jnp.float32),
        grid=grid,
        in_specs=[
            pl.BlockSpec((tm, tk), lambda i, k: (i, k)),       # A_mean tile (bf16)
            pl.BlockSpec((tk, f_in), lambda i, k: (k, 0)),     # X src tile (reduction)
            pl.BlockSpec((tm, f_in), lambda i, k: (i, 0)),     # X dst tile (self term)
            pl.BlockSpec((f_in, f_out), lambda i, k: (0, 0)),  # W_self
            pl.BlockSpec((f_in, f_out), lambda i, k: (0, 0)),  # W_neigh
            pl.BlockSpec((1, f_out), lambda i, k: (0, 0)),     # bias
        ],
        out_specs=pl.BlockSpec((tm, f_out), lambda i, k: (i, 0)),
        scratch_shapes=[pltpu.VMEM((tm, acc_width), jnp.float32)],
        compiler_params=pltpu.CompilerParams(
            dimension_semantics=("parallel", "arbitrary"),
            vmem_limit_bytes=vmem_limit),
    )(a_bf16, x, x, w_self, w_neigh, bias2d)
    return out[:n]


def sage_forward(a_mean, x, params):
    """h = relu(conv1(g, x)); h = conv2(g, h)"""
    # bf16 adjacency halves HBM traffic for the dominant N^2 operand; f32
    # accumulation happens inside the kernels via preferred_element_type.
    a_bf16 = a_mean.astype(jnp.bfloat16)
    h = sage_layer(a_bf16, x,
                   params["w_self1"], params["w_neigh1"], params["b1"],
                   apply_relu=True)
    # TODO(synk): for small graphs where the full hidden activation fits VMEM,
    # fuse both layers into one pallas_call to drop a launch + HBM round-trip;
    # layer 2's aggregation needs every row of h, so the tiled form keeps two calls.
    h = sage_layer(a_bf16, h,
                   params["w_self2"], params["w_neigh2"], params["b2"],
                   apply_relu=False)
    return h


def _reference(a_mean, x, params):
    h = x @ params["w_self1"] + (a_mean @ x) @ params["w_neigh1"] + params["b1"]
    h = jnp.maximum(h, 0.0)
    h = h @ params["w_self2"] + (a_mean @ h) @ params["w_neigh2"] + params["b2"]
    return h


if __name__ == "__main__":
    # Small shapes consistent with the module: N nodes, in/hid/out feature dims.
    N, IN_FEATS, HID_FEATS, OUT_FEATS = 64, 16, 32, 8

    key = jax.random.PRNGKey(0)
    k_adj, k_x, k1, k2, k3, k4 = jax.random.split(key, 6)

    # Deterministic synthetic graph: random directed edges, no self loops.
    adj = (jax.random.uniform(k_adj, (N, N)) < 0.15).astype(jnp.float32)
    adj = adj * (1.0 - jnp.eye(N, dtype=jnp.float32))
    in_deg = adj.sum(axis=1, keepdims=True)                       # [N, 1]
    a_mean = jnp.where(in_deg > 0, adj / jnp.maximum(in_deg, 1.0), 0.0)

    # Node features.
    x = jax.random.normal(k_x, (N, IN_FEATS), dtype=jnp.float32)

    # Deterministic parameter init (SAGEConv: fc_self, fc_neigh, bias per layer).
    def init_linear(k, fin, fout):
        scale = 1.0 / jnp.sqrt(jnp.float32(fin))
        return jax.random.uniform(k, (fin, fout), minval=-scale, maxval=scale,
                                  dtype=jnp.float32)

    params = {
        "w_self1": init_linear(k1, IN_FEATS, HID_FEATS),
        "w_neigh1": init_linear(k2, IN_FEATS, HID_FEATS),
        "b1": jnp.zeros((HID_FEATS,), jnp.float32),
        "w_self2": init_linear(k3, HID_FEATS, OUT_FEATS),
        "w_neigh2": init_linear(k4, HID_FEATS, OUT_FEATS),
        "b2": jnp.zeros((OUT_FEATS,), jnp.float32),
    }

    out = jax.block_until_ready(sage_forward(a_mean, x, params))
    ref = _reference(a_mean, x, params)
    assert out.shape == (N, OUT_FEATS)
    # Tolerance loosened vs. pure-f32 because the adjacency matmul runs in bf16
    # (f32 accumulation); errors are ~1e-3 at these magnitudes.
    assert jnp.allclose(out, ref, atol=2e-2, rtol=2e-2)
    print("KERNEL_OK")
</pallas_src>

<mosaic_0001>
module attributes {stable_mosaic.version = 11 : i64} {
  func.func @_sage_kernel_agg_first(%arg0: i32, %arg1: i32, %arg2: memref<64x64xbf16, #tpu.memory_space<vmem>>, %arg3: memref<64x16xf32, #tpu.memory_space<vmem>>, %arg4: memref<64x16xf32, #tpu.memory_space<vmem>>, %arg5: memref<16x32xf32, #tpu.memory_space<vmem>>, %arg6: memref<16x32xf32, #tpu.memory_space<vmem>>, %arg7: memref<1x32xf32, #tpu.memory_space<vmem>>, %arg8: memref<64x32xf32, #tpu.memory_space<vmem>>, %arg9: memref<64x16xf32, #tpu.memory_space<vmem>>) attributes {dimension_semantics = [#tpu.dimension_semantics<parallel>, #tpu.dimension_semantics<arbitrary>], iteration_bounds = array<i64: 1, 1>, scalar_prefetch = 0 : i64, scratch_operands = 1 : i64, tpu.core_type = #tpu.core_type<tc>, window_params = [{transform_indices = @transform_0, window_bounds = array<i64: 64, 64>}, {transform_indices = @transform_1, window_bounds = array<i64: 64, 16>}, {transform_indices = @transform_2, window_bounds = array<i64: 64, 16>}, {pipeline_mode = #tpu.pipeline_mode<synchronous>, transform_indices = @transform_3, window_bounds = array<i64: 16, 32>}, {pipeline_mode = #tpu.pipeline_mode<synchronous>, transform_indices = @transform_4, window_bounds = array<i64: 16, 32>}, {pipeline_mode = #tpu.pipeline_mode<synchronous>, transform_indices = @transform_5, window_bounds = array<i64: 1, 32>}, {transform_indices = @transform_6, window_bounds = array<i64: 64, 32>}]} {
    %c0_i32 = arith.constant 0 : i32
    %0 = arith.cmpi eq, %arg1, %c0_i32 : i32
    %1 = arith.extui %0 : i1 to i32
    %c0_i32_0 = arith.constant 0 : i32
    %2 = arith.cmpi ne, %1, %c0_i32_0 : i32
    scf.if %2 {
      %cst_10 = arith.constant 0.000000e+00 : f32
      %13 = vector.broadcast %cst_10 : f32 to vector<64x16xf32>
      %c0_11 = arith.constant 0 : index
      %c0_12 = arith.constant 0 : index
      %14 = vector.load %arg9[%c0_11, %c0_12] : memref<64x16xf32, #tpu.memory_space<vmem>>, vector<64x16xf32>
      tpu.vector_store %arg9[%c0_11, %c0_12], %13 {strides = array<i32>} : memref<64x16xf32, #tpu.memory_space<vmem>>, vector<64x16xf32>,
    } else {
    }
    %c0 = arith.constant 0 : index
    %c0_1 = arith.constant 0 : index
    %3 = vector.load %arg9[%c0, %c0_1] : memref<64x16xf32, #tpu.memory_space<vmem>>, vector<64x16xf32>
    %c0_2 = arith.constant 0 : index
    %c0_3 = arith.constant 0 : index
    %4 = vector.load %arg2[%c0_2, %c0_3] : memref<64x64xbf16, #tpu.memory_space<vmem>>, vector<64x64xbf16>
    %c0_4 = arith.constant 0 : index
    %c0_5 = arith.constant 0 : index
    %5 = vector.load %arg3[%c0_4, %c0_5] : memref<64x16xf32, #tpu.memory_space<vmem>>, vector<64x16xf32>
    %6 = arith.truncf %5 : vector<64x16xf32> to vector<64x16xbf16>
    %cst = arith.constant dense<0.000000e+00> : vector<64x16xf32>
    %7 = tpu.matmul %4, %6, %cst {dimension_numbers = #tpu.dot_dimension_numbers<[1], [0], [0], [1], [0, 0, 1, 1], [], []>} : vector<64x64xbf16>, vector<64x16xbf16>, vector<64x16xf32> -> vector<64x16xf32>
    %8 = arith.addf %3, %7 : vector<64x16xf32>
    %c0_6 = arith.constant 0 : index
    %c0_7 = arith.constant 0 : index
    %9 = vector.load %arg9[%c0_6, %c0_7] : memref<64x16xf32, #tpu.memory_space<vmem>>, vector<64x16xf32>
    tpu.vector_store %arg9[%c0_6, %c0_7], %8 {strides = array<i32>} : memref<64x16xf32, #tpu.memory_space<vmem>>, vector<64x16xf32>,
    %c0_i32_8 = arith.constant 0 : i32
    %10 = arith.cmpi eq, %arg1, %c0_i32_8 : i32
    %11 = arith.extui %10 : i1 to i32
    %c0_i32_9 = arith.constant 0 : i32
    %12 = arith.cmpi ne, %11, %c0_i32_9 : i32
    scf.if %12 {
      %c0_10 = arith.constant 0 : index
      %c0_11 = arith.constant 0 : index
      %13 = vector.load %arg4[%c0_10, %c0_11] : memref<64x16xf32, #tpu.memory_space<vmem>>, vector<64x16xf32>
      %c0_12 = arith.constant 0 : index
      %c0_13 = arith.constant 0 : index
      %14 = vector.load %arg5[%c0_12, %c0_13] : memref<16x32xf32, #tpu.memory_space<vmem>>, vector<16x32xf32>
      %cst_14 = arith.constant dense<0.000000e+00> : vector<64x32xf32>
      %15 = tpu.matmul %13, %14, %cst_14 {dimension_numbers = #tpu.dot_dimension_numbers<[1], [0], [0], [1], [0, 0, 1, 1], [], []>} : vector<64x16xf32>, vector<16x32xf32>, vector<64x32xf32> -> vector<64x32xf32>
      %c0_15 = arith.constant 0 : index
      %c0_16 = arith.constant 0 : index
      %16 = vector.load %arg9[%c0_15, %c0_16] : memref<64x16xf32, #tpu.memory_space<vmem>>, vector<64x16xf32>
      %c0_17 = arith.constant 0 : index
      %c0_18 = arith.constant 0 : index
      %17 = vector.load %arg6[%c0_17, %c0_18] : memref<16x32xf32, #tpu.memory_space<vmem>>, vector<16x32xf32>
      %cst_19 = arith.constant dense<0.000000e+00> : vector<64x32xf32>
      %18 = tpu.matmul %16, %17, %cst_19 {dimension_numbers = #tpu.dot_dimension_numbers<[1], [0], [0], [1], [0, 0, 1, 1], [], []>} : vector<64x16xf32>, vector<16x32xf32>, vector<64x32xf32> -> vector<64x32xf32>
      %19 = arith.addf %15, %18 : vector<64x32xf32>
      %c0_20 = arith.constant 0 : index
      %c0_21 = arith.constant 0 : index
      %20 = vector.load %arg7[%c0_20, %c0_21] : memref<1x32xf32, #tpu.memory_space<vmem>>, vector<1x32xf32>
      %21 = vector.broadcast %20 : vector<1x32xf32> to vector<64x32xf32>
      %22 = arith.addf %19, %21 : vector<64x32xf32>
      %cst_22 = arith.constant 0.000000e+00 : f32
      %23 = vector.broadcast %cst_22 : f32 to vector<64x32xf32>
      %24 = arith.maximumf %22, %23 : vector<64x32xf32>
      %c0_23 = arith.constant 0 : index
      %c0_24 = arith.constant 0 : index
      %25 = vector.load %arg8[%c0_23, %c0_24] : memref<64x32xf32, #tpu.memory_space<vmem>>, vector<64x32xf32>
      tpu.vector_store %arg8[%c0_23, %c0_24], %24 {strides = array<i32>} : memref<64x32xf32, #tpu.memory_space<vmem>>, vector<64x32xf32>,
    } else {
    }
    return
  }
  func.func @transform_0(%arg0: i32, %arg1: i32) -> (i32, i32) {
    %c0_i32 = arith.constant 0 : i32
    return %arg0, %arg1 : i32, i32
  }
  func.func @transform_1(%arg0: i32, %arg1: i32) -> (i32, i32) {
    %c0_i32 = arith.constant 0 : i32
    %c0_i32_0 = arith.constant 0 : i32
    return %arg1, %c0_i32 : i32, i32
  }
  func.func @transform_2(%arg0: i32, %arg1: i32) -> (i32, i32) {
    %c0_i32 = arith.constant 0 : i32
    %c0_i32_0 = arith.constant 0 : i32
    return %arg0, %c0_i32 : i32, i32
  }
  func.func @transform_3(%arg0: i32, %arg1: i32) -> (i32, i32) {
    %c0_i32 = arith.constant 0 : i32
    %c0_i32_0 = arith.constant 0 : i32
    %c0_i32_1 = arith.constant 0 : i32
    return %c0_i32, %c0_i32_0 : i32, i32
  }
  func.func @transform_4(%arg0: i32, %arg1: i32) -> (i32, i32) {
    %c0_i32 = arith.constant 0 : i32
    %c0_i32_0 = arith.constant 0 : i32
    %c0_i32_1 = arith.constant 0 : i32
    return %c0_i32, %c0_i32_0 : i32, i32
  }
  func.func @transform_5(%arg0: i32, %arg1: i32) -> (i32, i32) {
    %c0_i32 = arith.constant 0 : i32
    %c0_i32_0 = arith.constant 0 : i32
    %c0_i32_1 = arith.constant 0 : i32
    return %c0_i32, %c0_i32_0 : i32, i32
  }
  func.func @transform_6(%arg0: i32, %arg1: i32) -> (i32, i32) {
    %c0_i32 = arith.constant 0 : i32
    %c0_i32_0 = arith.constant 0 : i32
    return %arg0, %c0_i32 : i32, i32
  }
}

</mosaic_0001>

<llo_original>
// kernel: tpu_custom_call.1
$region0: #{tpu_custom_call.1}
  #allocation0 [shape = 'u32[]', space=smem, size = 0x4, offset = 0x4, fixed_abs, tag = 'smem constant byte address 0x4 - core index']
  #allocation1 [shape = 'u32[144,128]{1,0:T(1,128)}', space=vmem, size = 0x12000, scoped, tag = 'internal scratch']
  #allocation2 [shape = 'f32[64,16]{1,0:T(8,128)}', space=vmem, size = 0x8000, scoped, tag = 'scratch operand']
  %s0 = inlined_call_operand.vmem [shape: bf16[64,64], index: 0, kind: input, shape index: {}]
  %s1 = inlined_call_operand.vmem [shape: f32[64,16], index: 1, kind: input, shape index: {}]
  %s2 = inlined_call_operand.vmem [shape: f32[64,16], index: 2, kind: input, shape index: {}]
  %s3 = inlined_call_operand.vmem [shape: f32[16,32], index: 3, kind: input, shape index: {}]
  %s4 = inlined_call_operand.vmem [shape: f32[16,32], index: 4, kind: input, shape index: {}]
  %s5 = inlined_call_operand.vmem [shape: f32[1,32], index: 5, kind: input, shape index: {}]
  %s6 = inlined_call_operand.vmem [shape: f32[64,32], index: 6, kind: output, shape index: {}]
  %s7 = sld [smem:[#allocation0]]
  $region42: #{tpu_custom_call.1} parent=0
    _
  %s9 = ssub.s32 1, %s7
  %s10 = scalar_select 0, %s9, %s7
  // Predicated region
  $region2: #{tpu_custom_call.1} parent=0 // pred_check
    _
  $region3: #{tpu_custom_call.1} parent=0 // pred_check_branch
    %12 = sbr.rel (0) target = $region5
  $region4: #{tpu_custom_call.1} parent=0 // pred_region
    _
  $region5: #{tpu_custom_call.1} parent=0 // pred_fallthru
    _
  // Predicated region
  $region6: #{tpu_custom_call.1} parent=0 // pred_check
    _
  $region7: #{tpu_custom_call.1} parent=0 // pred_check_branch
    %14 = sbr.rel (0) target = $region9
  $region8: #{tpu_custom_call.1} parent=0 // pred_region
    _
  $region9: #{tpu_custom_call.1} parent=0 // pred_fallthru
    _
  // Predicated region
  $region10: #{tpu_custom_call.1} parent=0 // pred_check
    _
  $region11: #{tpu_custom_call.1} parent=0 // pred_check_branch
    %16 = sbr.rel (0) target = $region13
  $region12: #{tpu_custom_call.1} parent=0 // pred_region
    _
  $region13: #{tpu_custom_call.1} parent=0 // pred_fallthru
    _
  // Predicated region
  $region14: #{tpu_custom_call.1} parent=0 // pred_check
    _
  $region15: #{tpu_custom_call.1} parent=0 // pred_check_branch
    %18 = sbr.rel (0) target = $region17
  $region16: #{tpu_custom_call.1} parent=0 // pred_region
    _
  $region17: #{tpu_custom_call.1} parent=0 // pred_fallthru
    _
  // Predicated region
  $region18: #{tpu_custom_call.1} parent=0 // pred_check
    _
  $region19: #{tpu_custom_call.1} parent=0 // pred_check_branch
    %20 = sbr.rel (0) target = $region21
  $region20: #{tpu_custom_call.1} parent=0 // pred_region
    _
  $region21: #{tpu_custom_call.1} parent=0 // pred_fallthru
    _
  // Predicated region
  $region22: #{tpu_custom_call.1} parent=0 // pred_check
    _
  $region23: #{tpu_custom_call.1} parent=0 // pred_check_branch
    %22 = sbr.rel (0) target = $region25
  $region24: #{tpu_custom_call.1} parent=0 // pred_region
    _
  $region25: #{tpu_custom_call.1} parent=0 // pred_fallthru
    _
  %p24 = scmp.eq.s32.totalorder 0, 0
  // Predicated region
  $region26: #{tpu_custom_call.1} parent=0 // pred_check
    %p25 = pneg %p24
  $region27: #{tpu_custom_call.1} parent=0 // pred_check_branch
    %27 = sbr.rel (%p25) target = $region29
  $region28: #{tpu_custom_call.1} parent=0 // pred_region
    %vm28 = vcmask 130048
    %29 = vst.msk [vmem:[#allocation2] sm:$0xff] %vm28, 0.0
    %30 = vst.msk [vmem:[#allocation2 + $0x8] sm:$0xff] %vm28, 0.0
    %31 = vst.msk [vmem:[#allocation2 + $0x10] sm:$0xff] %vm28, 0.0
    %32 = vst.msk [vmem:[#allocation2 + $0x18] sm:$0xff] %vm28, 0.0
    %33 = vst.msk [vmem:[#allocation2 + $0x20] sm:$0xff] %vm28, 0.0
    %34 = vst.msk [vmem:[#allocation2 + $0x28] sm:$0xff] %vm28, 0.0
    %35 = vst.msk [vmem:[#allocation2 + $0x30] sm:$0xff] %vm28, 0.0
    %36 = vst.msk [vmem:[#allocation2 + $0x38] sm:$0xff] %vm28, 0.0
  $region29: #{tpu_custom_call.1} parent=0 // pred_fallthru
    _
  %v37 = vld [vmem:[#allocation2] sm:$0xff]
  %v38 = vld [vmem:[#allocation2 + $0x8] sm:$0xff]
  %v39 = vld [vmem:[#allocation2 + $0x10] sm:$0xff]
  %v40 = vld [vmem:[#allocation2 + $0x18] sm:$0xff]
  %v41 = vld [vmem:[#allocation2 + $0x20] sm:$0xff]
  %v42 = vld [vmem:[#allocation2 + $0x28] sm:$0xff]
  %v43 = vld [vmem:[#allocation2 + $0x30] sm:$0xff]
  %v44 = vld [vmem:[#allocation2 + $0x38] sm:$0xff]
  %v45 = vld [vmem:[%s0] sm:$0xf]
  %v46 = vld [vmem:[%s0 + $0x4] sm:$0xf]
  %v47 = vld [vmem:[%s0 + $0x8] sm:$0xf]
  %v48 = vld [vmem:[%s0 + $0xc] sm:$0xf]
  %v49 = vld [vmem:[%s0 + $0x10] sm:$0xf]
  %v50 = vld [vmem:[%s0 + $0x14] sm:$0xf]
  %v51 = vld [vmem:[%s0 + $0x18] sm:$0xf]
  %v52 = vld [vmem:[%s0 + $0x1c] sm:$0xf]
  %v53 = vld [vmem:[%s1] sm:$0xff]
  %v54 = vld [vmem:[%s1 + $0x8] sm:$0xff]
  %v55 = vld [vmem:[%s1 + $0x10] sm:$0xff]
  %v56 = vld [vmem:[%s1 + $0x18] sm:$0xff]
  %v57 = vld [vmem:[%s1 + $0x20] sm:$0xff]
  %v58 = vld [vmem:[%s1 + $0x28] sm:$0xff]
  %v59 = vld [vmem:[%s1 + $0x30] sm:$0xff]
  %v60 = vld [vmem:[%s1 + $0x38] sm:$0xff]
  %v61 = vpack.c.bf16 %v54, %v53
  %v62 = vpack.c.bf16 %v56, %v55
  %v63 = vpack.c.bf16 %v58, %v57
  %v64 = vpack.c.bf16 %v60, %v59
  %v73 = vunpack.c.l.b16 %v45
  %v74 = vunpack.c.l.b16 %v46
  %v75 = vunpack.c.l.b16 %v47
  %v76 = vunpack.c.l.b16 %v48
  %v77 = vunpack.c.l.b16 %v49
  %v78 = vunpack.c.l.b16 %v50
  %v79 = vunpack.c.l.b16 %v51
  %v80 = vunpack.c.l.b16 %v52
  %v81 = vpack.c.b16 %v74, %v73
  %v82 = vpack.c.b16 %v76, %v75
  %v83 = vpack.c.b16 %v78, %v77
  %v84 = vpack.c.b16 %v80, %v79
  %vm85 = vcmask 523264
  %v87 = vsel %vm85, %v81, 0
  %v90 = vsel %vm85, %v82, 0
  %v93 = vsel %vm85, %v83, 0
  %v96 = vsel %vm85, %v84, 0
  %98 = vmatprep.subr.bf16.mxu0 0
  %99 = vmatpush1.bf16.msra.mxu0 %v61
  %100 = vmatprep.subr.bf16.mxu0 0
  %101 = vmatpush1.bf16.msra.mxu0 %v62
  %102 = vmatprep.subr.bf16.mxu0 0
  %103 = vmatpush1.bf16.msra.mxu0 %v63
  %104 = vmatprep.subr.bf16.mxu0 0
  %105 = vmatpush1.bf16.msra.mxu0 %v64
  %106 = vmatprep.subr.bf16.mxu0 0
  %107 = vmatpush1.bf16.msra.mxu0 0
  %108 = vmatprep.subr.bf16.mxu0 0
  %109 = vmatpush1.bf16.msra.mxu0 0
  %110 = vmatprep.subr.bf16.mxu0 0
  %111 = vmatpush1.bf16.msra.mxu0 0
  %112 = vmatprep.subr.bf16.mxu0 0
  %113 = vmatpush1.bf16.msra.mxu0 0
  %114 = vmatprep.subr.bf16.mxu0 0
  %115 = vmatpush1.bf16.msra.mxu0 0
  %116 = vmatprep.subr.bf16.mxu0 0
  %117 = vmatpush1.bf16.msra.mxu0 0
  %118 = vmatprep.subr.bf16.mxu0 0
  %119 = vmatpush1.bf16.msra.mxu0 0
  %120 = vmatprep.subr.bf16.mxu0 0
  %121 = vmatpush1.bf16.msra.mxu0 0
  %122 = vmatprep.subr.bf16.mxu0 0
  %123 = vmatpush1.bf16.msra.mxu0 0
  %124 = vmatprep.subr.bf16.mxu0 0
  %125 = vmatpush1.bf16.msra.mxu0 0
  %126 = vmatprep.subr.bf16.mxu0 0
  %127 = vmatpush1.bf16.msra.mxu0 0
  %128 = vmatprep.subr.bf16.mxu0 0
  %129 = vmatpush1.bf16.msra.mxu0 0
  %130 = vmatprep.mubr.bf16.mxu0 0
  %131 = vmatmul.mubr.bf16.gmra.mrb[0].mxu0 %v87
  %v132 = vpop.f32.mrb[0].mxu0
  %v133 = vadd.f32 0.0, %v132
  %v134 = vpop.f32.mrb[0].mxu0
  %v135 = vpop.f32.mrb[0].mxu0
  %v136 = vadd.f32 0.0, %v135
  %v137 = vpop.f32.mrb[0].mxu0
  %138 = vmatprep.mubr.bf16.mxu0 0
  %139 = vmatmul.mubr.bf16.gmra.mrb[0].mxu0 %v90
  %v140 = vpop.f32.mrb[0].mxu0
  %v141 = vadd.f32 0.0, %v140
  %v142 = vpop.f32.mrb[0].mxu0
  %v143 = vpop.f32.mrb[0].mxu0
  %v144 = vadd.f32 0.0, %v143
  %v145 = vpop.f32.mrb[0].mxu0
  %146 = vmatprep.mubr.bf16.mxu0 0
  %147 = vmatmul.mubr.bf16.gmra.mrb[0].mxu0 %v93
  %v148 = vpop.f32.mrb[0].mxu0
  %v149 = vadd.f32 0.0, %v148
  %v150 = vpop.f32.mrb[0].mxu0
  %v151 = vpop.f32.mrb[0].mxu0
  %v152 = vadd.f32 0.0, %v151
  %v153 = vpop.f32.mrb[0].mxu0
  %154 = vmatprep.mubr.bf16.mxu0 0
  %155 = vmatmul.mubr.bf16.gmra.mrb[0].mxu0 %v96
  %v156 = vpop.f32.mrb[0].mxu0
  %v157 = vadd.f32 0.0, %v156
  %v158 = vpop.f32.mrb[0].mxu0
  %v159 = vpop.f32.mrb[0].mxu0
  %v160 = vadd.f32 0.0, %v159
  %v161 = vpop.f32.mrb[0].mxu0
  %162 = vdwg.mxu0
  %v163 = vadd.f32 %v37, %v133
  %v164 = vadd.f32 %v38, %v136
  %v165 = vadd.f32 %v39, %v141
  %v166 = vadd.f32 %v40, %v144
  %v167 = vadd.f32 %v41, %v149
  %v168 = vadd.f32 %v42, %v152
  %v169 = vadd.f32 %v43, %v157
  %v170 = vadd.f32 %v44, %v160
  %vm171 = vcmask 130048
  %172 = vst.msk [vmem:[#allocation2] sm:$0xff] %vm171, %v163
  %173 = vst.msk [vmem:[#allocation2 + $0x8] sm:$0xff] %vm171, %v164
  %174 = vst.msk [vmem:[#allocation2 + $0x10] sm:$0xff] %vm171, %v165
  %175 = vst.msk [vmem:[#allocation2 + $0x18] sm:$0xff] %vm171, %v166
  %176 = vst.msk [vmem:[#allocation2 + $0x20] sm:$0xff] %vm171, %v167
  %177 = vst.msk [vmem:[#allocation2 + $0x28] sm:$0xff] %vm171, %v168
  %178 = vst.msk [vmem:[#allocation2 + $0x30] sm:$0xff] %vm171, %v169
  %179 = vst.msk [vmem:[#allocation2 + $0x38] sm:$0xff] %vm171, %v170
  // Predicated region
  $region30: #{tpu_custom_call.1} parent=0 // pred_check
    %p180 = pneg %p24
  $region31: #{tpu_custom_call.1} parent=0 // pred_check_branch
    %182 = sbr.rel (%p180) target = $region33
  $region32: #{tpu_custom_call.1} parent=0 // pred_region
    %v183 = vld [vmem:[%s2] sm:$0xff]
    %v184 = vld [vmem:[%s2 + $0x8] sm:$0xff]
    %v185 = vld [vmem:[%s2 + $0x10] sm:$0xff]
    %v186 = vld [vmem:[%s2 + $0x18] sm:$0xff]
    %v187 = vld [vmem:[%s2 + $0x20] sm:$0xff]
    %v188 = vld [vmem:[%s2 + $0x28] sm:$0xff]
    %v189 = vld [vmem:[%s2 + $0x30] sm:$0xff]
    %v190 = vld [vmem:[%s2 + $0x38] sm:$0xff]
    %v191 = vld [vmem:[%s3] sm:$0xff]
    %v192 = vld [vmem:[%s3 + $0x8] sm:$0xff]
    %v193 = vld [vmem:[#allocation2] sm:$0xff]
    %v194 = vld [vmem:[#allocation2 + $0x8] sm:$0xff]
    %v195 = vld [vmem:[#allocation2 + $0x10] sm:$0xff]
    %v196 = vld [vmem:[#allocation2 + $0x18] sm:$0xff]
    %v197 = vld [vmem:[#allocation2 + $0x20] sm:$0xff]
    %v198 = vld [vmem:[#allocation2 + $0x28] sm:$0xff]
    %v199 = vld [vmem:[#allocation2 + $0x30] sm:$0xff]
    %v200 = vld [vmem:[#allocation2 + $0x38] sm:$0xff]
    %v201 = vld [vmem:[%s4] sm:$0xff]
    %v202 = vld [vmem:[%s4 + $0x8] sm:$0xff]
    %v204 = vsel %vm171, %v193, 0
    %v207 = vsel %vm171, %v194, 0
    %v210 = vsel %vm171, %v195, 0
    %v213 = vsel %vm171, %v196, 0
    %v216 = vsel %vm171, %v197, 0
    %v219 = vsel %vm171, %v198, 0
    %v222 = vsel %vm171, %v199, 0
    %v225 = vsel %vm171, %v200, 0
    %227 = vmatprep.subr.mxu0 0.0
    %228 = vmatpush1.msra.mxu0 %v201
    %229 = vmatprep.subr.mxu0 0.0
    %230 = vmatpush1.msra.mxu0 %v202
    %231 = vmatprep.subr.mxu0 0.0
    %232 = vmatpush1.msra.mxu0 0.0
    %233 = vmatprep.subr.mxu0 0.0
    %234 = vmatpush1.msra.mxu0 0.0
    %235 = vmatprep.subr.mxu0 0.0
    %236 = vmatpush1.msra.mxu0 0.0
    %237 = vmatprep.subr.mxu0 0.0
    %238 = vmatpush1.msra.mxu0 0.0
    %239 = vmatprep.subr.mxu0 0.0
    %240 = vmatpush1.msra.mxu0 0.0
    %241 = vmatprep.subr.mxu0 0.0
    %242 = vmatpush1.msra.mxu0 0.0
    %243 = vmatprep.subr.mxu0 0.0
    %244 = vmatpush1.msra.mxu0 0.0
    %245 = vmatprep.subr.mxu0 0.0
    %246 = vmatpush1.msra.mxu0 0.0
    %247 = vmatprep.subr.mxu0 0.0
    %248 = vmatpush1.msra.mxu0 0.0
    %249 = vmatprep.subr.mxu0 0.0
    %250 = vmatpush1.msra.mxu0 0.0
    %251 = vmatprep.subr.mxu0 0.0
    %252 = vmatpush1.msra.mxu0 0.0
    %253 = vmatprep.subr.mxu0 0.0
    %254 = vmatpush1.msra.mxu0 0.0
    %255 = vmatprep.subr.mxu0 0.0
    %256 = vmatpush1.msra.mxu0 0.0
    %257 = vmatprep.subr.mxu0 0.0
    %258 = vmatpush1.msra.mxu0 0.0
    %259 = vmatprep.subr.mxu0 0.0
    %260 = vmatpush1.msra.mxu0 0.0
    %261 = vmatprep.subr.mxu0 0.0
    %262 = vmatpush1.msra.mxu0 0.0
    %263 = vmatprep.subr.mxu0 0.0
    %264 = vmatpush1.msra.mxu0 0.0
    %265 = vmatprep.subr.mxu0 0.0
    %266 = vmatpush1.msra.mxu0 0.0
    %267 = vmatprep.subr.mxu0 0.0
    %268 = vmatpush1.msra.mxu0 0.0
    %269 = vmatprep.subr.mxu0 0.0
    %270 = vmatpush1.msra.mxu0 0.0
    %271 = vmatprep.subr.mxu0 0.0
    %272 = vmatpush1.msra.mxu0 0.0
    %273 = vmatprep.subr.mxu0 0.0
    %274 = vmatpush1.msra.mxu0 0.0
    %275 = vmatprep.subr.mxu0 0.0
    %276 = vmatpush1.msra.mxu0 0.0
    %277 = vmatprep.subr.mxu0 0.0
    %278 = vmatpush1.msra.mxu0 0.0
    %279 = vmatprep.subr.mxu0 0.0
    %280 = vmatpush1.msra.mxu0 0.0
    %281 = vmatprep.subr.mxu0 0.0
    %282 = vmatpush1.msra.mxu0 0.0
    %283 = vmatprep.subr.mxu0 0.0
    %284 = vmatpush1.msra.mxu0 0.0
    %285 = vmatprep.subr.mxu0 0.0
    %286 = vmatpush1.msra.mxu0 0.0
    %287 = vmatprep.subr.mxu0 0.0
    %288 = vmatpush1.msra.mxu0 0.0
    %289 = vmatprep.subr.mxu0 0.0
    %290 = vmatpush1.msra.mxu0 0.0
    %291 = vmatprep.mubr.f32.mxu0 0.0
    %292 = vmatmul.mubr.f32.gmra.mrb[0].mxu0 %v204
    %v293 = vpop.f32.mrb[0].mxu0
    %v294 = vadd.f32 0.0, %v293
    %v295 = vpop.f32.mrb[0].mxu0
    %296 = vmatprep.mubr.f32.mxu0 0.0
    %297 = vmatmul.mubr.f32.gmra.mrb[0].mxu0 %v207
    %v298 = vpop.f32.mrb[0].mxu0
    %v299 = vadd.f32 0.0, %v298
    %v300 = vpop.f32.mrb[0].mxu0
    %301 = vmatprep.mubr.f32.mxu0 0.0
    %302 = vmatmul.mubr.f32.gmra.mrb[0].mxu0 %v210
    %v303 = vpop.f32.mrb[0].mxu0
    %v304 = vadd.f32 0.0, %v303
    %v305 = vpop.f32.mrb[0].mxu0
    %306 = vmatprep.mubr.f32.mxu0 0.0
    %307 = vmatmul.mubr.f32.gmra.mrb[0].mxu0 %v213
    %v308 = vpop.f32.mrb[0].mxu0
    %v309 = vadd.f32 0.0, %v308
    %v310 = vpop.f32.mrb[0].mxu0
    %311 = vmatprep.mubr.f32.mxu0 0.0
    %312 = vmatmul.mubr.f32.gmra.mrb[0].mxu0 %v216
    %v313 = vpop.f32.mrb[0].mxu0
    %v314 = vadd.f32 0.0, %v313
    %v315 = vpop.f32.mrb[0].mxu0
    %316 = vmatprep.mubr.f32.mxu0 0.0
    %317 = vmatmul.mubr.f32.gmra.mrb[0].mxu0 %v219
    %v318 = vpop.f32.mrb[0].mxu0
    %v319 = vadd.f32 0.0, %v318
    %v320 = vpop.f32.mrb[0].mxu0
    %321 = vmatprep.mubr.f32.mxu0 0.0
    %322 = vmatmul.mubr.f32.gmra.mrb[0].mxu0 %v222
    %v323 = vpop.f32.mrb[0].mxu0
    %v324 = vadd.f32 0.0, %v323
    %v325 = vpop.f32.mrb[0].mxu0
    %326 = vmatprep.mubr.f32.mxu0 0.0
    %327 = vmatmul.mubr.f32.gmra.mrb[0].mxu0 %v225
    %v328 = vpop.f32.mrb[0].mxu0
    %v329 = vadd.f32 0.0, %v328
    %v330 = vpop.f32.mrb[0].mxu0
    %331 = vdwg.mxu0
    %v333 = vsel %vm171, %v183, 0
    %v336 = vsel %vm171, %v184, 0
    %v339 = vsel %vm171, %v185, 0
    %v342 = vsel %vm171, %v186, 0
    %v345 = vsel %vm171, %v187, 0
    %v348 = vsel %vm171, %v188, 0
    %v351 = vsel %vm171, %v189, 0
    %v354 = vsel %vm171, %v190, 0
    %356 = vmatprep.subr.mxu0 0.0
    %357 = vmatpush1.msra.mxu0 %v191
    %358 = vmatprep.subr.mxu0 0.0
    %359 = vmatpush1.msra.mxu0 %v192
    %360 = vmatprep.subr.mxu0 0.0
    %361 = vmatpush1.msra.mxu0 0.0
    %362 = vmatprep.subr.mxu0 0.0
    %363 = vmatpush1.msra.mxu0 0.0
    %364 = vmatprep.subr.mxu0 0.0
    %365 = vmatpush1.msra.mxu0 0.0
    %366 = vmatprep.subr.mxu0 0.0
    %367 = vmatpush1.msra.mxu0 0.0
    %368 = vmatprep.subr.mxu0 0.0
    %369 = vmatpush1.msra.mxu0 0.0
    %370 = vmatprep.subr.mxu0 0.0
    %371 = vmatpush1.msra.mxu0 0.0
    %372 = vmatprep.subr.mxu0 0.0
    %373 = vmatpush1.msra.mxu0 0.0
    %374 = vmatprep.subr.mxu0 0.0
    %375 = vmatpush1.msra.mxu0 0.0
    %376 = vmatprep.subr.mxu0 0.0
    %377 = vmatpush1.msra.mxu0 0.0
    %378 = vmatprep.subr.mxu0 0.0
    %379 = vmatpush1.msra.mxu0 0.0
    %380 = vmatprep.subr.mxu0 0.0
    %381 = vmatpush1.msra.mxu0 0.0
    %382 = vmatprep.subr.mxu0 0.0
    %383 = vmatpush1.msra.mxu0 0.0
    %384 = vmatprep.subr.mxu0 0.0
    %385 = vmatpush1.msra.mxu0 0.0
    %386 = vmatprep.subr.mxu0 0.0
    %387 = vmatpush1.msra.mxu0 0.0
    %388 = vmatprep.subr.mxu0 0.0
    %389 = vmatpush1.msra.mxu0 0.0
    %390 = vmatprep.subr.mxu0 0.0
    %391 = vmatpush1.msra.mxu0 0.0
    %392 = vmatprep.subr.mxu0 0.0
    %393 = vmatpush1.msra.mxu0 0.0
    %394 = vmatprep.subr.mxu0 0.0
    %395 = vmatpush1.msra.mxu0 0.0
    %396 = vmatprep.subr.mxu0 0.0
    %397 = vmatpush1.msra.mxu0 0.0
    %398 = vmatprep.subr.mxu0 0.0
    %399 = vmatpush1.msra.mxu0 0.0
    %400 = vmatprep.subr.mxu0 0.0
    %401 = vmatpush1.msra.mxu0 0.0
    %402 = vmatprep.subr.mxu0 0.0
    %403 = vmatpush1.msra.mxu0 0.0
    %404 = vmatprep.subr.mxu0 0.0
    %405 = vmatpush1.msra.mxu0 0.0
    %406 = vmatprep.subr.mxu0 0.0
    %407 = vmatpush1.msra.mxu0 0.0
    %408 = vmatprep.subr.mxu0 0.0
    %409 = vmatpush1.msra.mxu0 0.0
    %410 = vmatprep.subr.mxu0 0.0
    %411 = vmatpush1.msra.mxu0 0.0
    %412 = vmatprep.subr.mxu0 0.0
    %413 = vmatpush1.msra.mxu0 0.0
    %414 = vmatprep.subr.mxu0 0.0
    %415 = vmatpush1.msra.mxu0 0.0
    %416 = vmatprep.subr.mxu0 0.0
    %417 = vmatpush1.msra.mxu0 0.0
    %418 = vmatprep.subr.mxu0 0.0
    %419 = vmatpush1.msra.mxu0 0.0
    %420 = vmatprep.mubr.f32.mxu0 0.0
    %421 = vmatmul.mubr.f32.gmra.mrb[0].mxu0 %v333
    %v422 = vpop.f32.mrb[0].mxu0
    %v423 = vadd.f32 %v294, %v422
    %v424 = vpop.f32.mrb[0].mxu0
    %425 = vmatprep.mubr.f32.mxu0 0.0
    %426 = vmatmul.mubr.f32.gmra.mrb[0].mxu0 %v336
    %v427 = vpop.f32.mrb[0].mxu0
    %v428 = vadd.f32 %v299, %v427
    %v429 = vpop.f32.mrb[0].mxu0
    %430 = vmatprep.mubr.f32.mxu0 0.0
    %431 = vmatmul.mubr.f32.gmra.mrb[0].mxu0 %v339
    %v432 = vpop.f32.mrb[0].mxu0
    %v433 = vadd.f32 %v304, %v432
    %v434 = vpop.f32.mrb[0].mxu0
    %435 = vmatprep.mubr.f32.mxu0 0.0
    %436 = vmatmul.mubr.f32.gmra.mrb[0].mxu0 %v342
    %v437 = vpop.f32.mrb[0].mxu0
    %v438 = vadd.f32 %v309, %v437
    %v439 = vpop.f32.mrb[0].mxu0
    %440 = vmatprep.mubr.f32.mxu0 0.0
    %441 = vmatmul.mubr.f32.gmra.mrb[0].mxu0 %v345
    %v442 = vpop.f32.mrb[0].mxu0
    %v443 = vadd.f32 %v314, %v442
    %v444 = vpop.f32.mrb[0].mxu0
    %445 = vmatprep.mubr.f32.mxu0 0.0
    %446 = vmatmul.mubr.f32.gmra.mrb[0].mxu0 %v348
    %v447 = vpop.f32.mrb[0].mxu0
    %v448 = vadd.f32 %v319, %v447
    %v449 = vpop.f32.mrb[0].mxu0
    %450 = vmatprep.mubr.f32.mxu0 0.0
    %451 = vmatmul.mubr.f32.gmra.mrb[0].mxu0 %v351
    %v452 = vpop.f32.mrb[0].mxu0
    %v453 = vadd.f32 %v324, %v452
    %v454 = vpop.f32.mrb[0].mxu0
    %455 = vmatprep.mubr.f32.mxu0 0.0
    %456 = vmatmul.mubr.f32.gmra.mrb[0].mxu0 %v354
    %v457 = vpop.f32.mrb[0].mxu0
    %v458 = vadd.f32 %v329, %v457
    %v459 = vpop.f32.mrb[0].mxu0
    %460 = vdwg.mxu0
    %v461 = vld [vmem:[%s5] sm:$0x1]
    %v463 = vlaneseq
    %v464 = vshrl.u32 %v463, 7
    %v465 = vsub.s32 0, %v464
    %v466 = vrot.slane %v461, %v465
    %v468 = vadd.f32 %v423, %v466
    %v469 = vadd.f32 %v428, %v466
    %v470 = vadd.f32 %v433, %v466
    %v471 = vadd.f32 %v438, %v466
    %v472 = vadd.f32 %v443, %v466
    %v473 = vadd.f32 %v448, %v466
    %v474 = vadd.f32 %v453, %v466
    %v475 = vadd.f32 %v458, %v466
    %v476 = vmax.f32 %v468, 0.0
    %v477 = vmax.f32 %v469, 0.0
    %v478 = vmax.f32 %v470, 0.0
    %v479 = vmax.f32 %v471, 0.0
    %v480 = vmax.f32 %v472, 0.0
    %v481 = vmax.f32 %v473, 0.0
    %v482 = vmax.f32 %v474, 0.0
    %v483 = vmax.f32 %v475, 0.0
    %vm484 = vcmask 261120
    %485 = vst.msk [vmem:[%s6] sm:$0xff] %vm484, %v476
    %486 = vst.msk [vmem:[%s6 + $0x8] sm:$0xff] %vm484, %v477
    %487 = vst.msk [vmem:[%s6 + $0x10] sm:$0xff] %vm484, %v478
    %488 = vst.msk [vmem:[%s6 + $0x18] sm:$0xff] %vm484, %v479
    %489 = vst.msk [vmem:[%s6 + $0x20] sm:$0xff] %vm484, %v480
    %490 = vst.msk [vmem:[%s6 + $0x28] sm:$0xff] %vm484, %v481
    %491 = vst.msk [vmem:[%s6 + $0x30] sm:$0xff] %vm484, %v482
    %492 = vst.msk [vmem:[%s6 + $0x38] sm:$0xff] %vm484, %v483
  $region33: #{tpu_custom_call.1} parent=0 // pred_fallthru
    _
  // Predicated region
  $region34: #{tpu_custom_call.1} parent=0 // pred_check
    _
  $region35: #{tpu_custom_call.1} parent=0 // pred_check_branch
    %494 = sbr.rel (0) target = $region37
  $region36: #{tpu_custom_call.1} parent=0 // pred_region
    _
  $region37: #{tpu_custom_call.1} parent=0 // pred_fallthru
    _
  // Predicated region
  $region38: #{tpu_custom_call.1} parent=0 // pred_check
    _
  $region39: #{tpu_custom_call.1} parent=0 // pred_check_branch
    %496 = sbr.rel (0) target = $region41
  $region40: #{tpu_custom_call.1} parent=0 // pred_region
    _
  $region41: #{tpu_custom_call.1} parent=0 // pred_fallthru
    _

</llo_original>
